<compile_context>
chip_gen: v5e
topology: v5e:2x2
jax: 0.10.0
libtpu: 0.0.40
codegen_flags: <defaults>
</compile_context>

<pallas_src>
import functools

import numpy as np
import jax
import jax.numpy as jnp
from jax.experimental import pallas as pl
from jax.experimental.pallas import tpu as pltpu


def _ceil_div(a: int, b: int) -> int:
    return -(-a // b)


@functools.lru_cache(maxsize=None)
def _adaptive_pool_tables(H: int, W: int, OH: int, OW: int):
    """Host-built tables for adaptive average pooling (cached per shape).

    Returns:
      M:   (H*W, OH*OW) float32 0/1 membership matrix (exact in any dtype).
      inv: (1, OH*OW)   float32 per-output-pixel 1/window_size.

    PyTorch adaptive_avg_pool2d window rule:
        start = floor(o * I / O),  end = ceil((o + 1) * I / O)
    """
    def bounds(I, O):
        o = np.arange(O, dtype=np.int64)
        return (o * I) // O, -((-(o + 1) * I) // O)

    hs, he = bounds(H, OH)
    ws, we = bounds(W, OW)
    h = np.arange(H, dtype=np.int64)[:, None]
    w = np.arange(W, dtype=np.int64)[:, None]
    mh = ((h >= hs) & (h < he)).astype(np.float32)            # (H, OH)
    mw = ((w >= ws) & (w < we)).astype(np.float32)            # (W, OW)
    M = (mh[:, None, :, None] * mw[None, :, None, :]).reshape(H * W, OH * OW)
    counts = (he - hs)[:, None] * (we - ws)[None, :]          # (OH, OW)
    inv = (1.0 / counts.astype(np.float64)).astype(np.float32).reshape(1, OH * OW)
    return M, inv


@functools.lru_cache(maxsize=1)
def _chip_info():
    """(per-TensorCore VMEM bytes [conservative], num TensorCores per chip)."""
    vmem_cap = 64 * 1024 * 1024
    num_tc = 1
    try:
        info = pltpu.get_tpu_info()
        cap = getattr(info, "vmem_capacity_bytes", None)
        if cap:
            vmem_cap = int(cap)
        for attr in ("num_tensorcores", "tensorcore_count"):
            v = getattr(info, attr, None)
            if v:
                num_tc = int(v)
                break
    except Exception:
        pass
    if num_tc == 1:
        try:
            kind = jax.devices()[0].device_kind.lower()
            if "v7" in kind:          # v7x: 2 TensorCores per chip
                num_tc = 2
        except Exception:
            pass
    # get_tpu_info may report a chip-level figure; never assume more than the
    # 64 MiB/TC of v7x so the same tiling is safe on every generation.
    per_core_cap = min(vmem_cap, 64 * 1024 * 1024)
    return per_core_cap, num_tc


def _largest_aligned_divisor(hw_pad: int, cap_cols: int) -> int:
    """Largest multiple of 128 that divides hw_pad and is <= cap_cols."""
    units = hw_pad // 128
    cap_units = max(1, cap_cols // 128)
    best = 1
    d = 1
    while d <= cap_units:
        if units % d == 0:
            best = d
        d += 1
    return best * 128


def _pool_kernel_single(x_ref, m_ref, inv_ref, o_ref, *, precision):
    # Fast path (whole spatial extent in one K block): no scratch, no gates.
    acc = jnp.dot(x_ref[...], m_ref[...],
                  preferred_element_type=jnp.float32, precision=precision)
    o_ref[...] = (acc * inv_ref[...]).astype(o_ref.dtype)


def _pool_kernel_kblocked(x_ref, m_ref, inv_ref, o_ref, acc_ref, *, precision):
    k = pl.program_id(1)

    @pl.when(k == 0)
    def _():
        acc_ref[...] = jnp.zeros_like(acc_ref)

    acc_ref[...] += jnp.dot(x_ref[...], m_ref[...],
                            preferred_element_type=jnp.float32,
                            precision=precision)

    @pl.when(k == pl.num_programs(1) - 1)
    def _():
        # Per-output-pixel 1/window_size scale in f32, then cast to out dtype.
        o_ref[...] = (acc_ref[...] * inv_ref[...]).astype(o_ref.dtype)


def log_quantized_adaptive_avg_pool2d(x: jax.Array, output_size):
    """Forward of LogQuantizedAdaptiveAvgPool2d (default, non-quantized path).

    x: (N, C, H, W) float array.  Returns (N, C, OH, OW), matching
    F.adaptive_avg_pool2d(x, output_size).
    """
    # TODO(synk): the activation-quantized branch (LogQuantizedTensor in/out
    # with log2 re-quantization) and the training-time running_max_abs EMA are
    # not exercised by the default forward and are not implemented here.
    if isinstance(output_size, int):
        output_size = (output_size, output_size)
    OH, OW = int(output_size[0]), int(output_size[1])
    N, C, H, W = x.shape
    rows, HW, OHOW = N * C, H * W, OH * OW

    M_np, inv_np = _adaptive_pool_tables(H, W, OH, OW)

    xbytes = jnp.dtype(x.dtype).itemsize
    align = max(8, 32 // xbytes)          # sublanes: 8 (f32) / 16 (bf16) / 32 (i8)

    per_core_cap, num_tc = _chip_info()
    work_budget = int(per_core_cap * 0.6)          # target working-set bytes

    # --- spatial (contraction) tiling -------------------------------------
    # Pad H*W only to the next 128-lane multiple; pick k_tile as a divisor of
    # hw_pad so the K axis never needs further padding (no jnp.pad blow-up).
    hw_pad = _ceil_div(HW, 128) * 128
    K_TILE_CAP = 2048
    k_tile = _largest_aligned_divisor(hw_pad, min(K_TILE_CAP, hw_pad))
    # Shrink k_tile if the double-buffered membership block alone would eat
    # more than ~25% of the budget (large OH*OW outputs).
    while k_tile > 128 and 2 * k_tile * OHOW * xbytes > work_budget // 4:
        k_tile = _largest_aligned_divisor(hw_pad, k_tile - 128)
    num_k = hw_pad // k_tile

    # --- row (N*C) tiling ---------------------------------------------------
    rows_aligned = _ceil_div(rows, align) * align
    per_row = (2 * k_tile * xbytes                      # double-buffered x block
               + 2 * OHOW * xbytes                      # double-buffered out block
               + (OHOW * 4 if num_k > 1 else 0))        # f32 accumulator
    fixed = 2 * k_tile * OHOW * xbytes + 2 * OHOW * 4   # M + inv blocks
    RT_CAP = 1024
    rt = (work_budget - fixed) // per_row
    rt = min(rt, RT_CAP, rows_aligned)
    rt = max(align, (rt // align) * align)

    # Force >= num_tc row tiles only on multi-TensorCore chips (v7x); a split
    # on single-TC chips just adds per-step overhead.
    nrt_min = num_tc if (num_tc > 1 and rows_aligned >= num_tc * align) else 1
    num_row_tiles = max(_ceil_div(rows_aligned, rt), nrt_min)
    # Re-balance: round the tile UP to alignment so tiles are nearly full and
    # no mostly-padding trailing tile is generated.
    rt = align * _ceil_div(_ceil_div(rows_aligned, num_row_tiles), align)
    rows_pad = num_row_tiles * rt

    # --- wrapper-side padding (only when actually required) ------------------
    x_flat = x.reshape(rows, HW)
    if rows_pad != rows or hw_pad != HW:
        # <=127 junk columns and <= (align * num_row_tiles) junk rows; skipped
        # entirely for naturally aligned shapes (224x224, 256x256, ...).
        x_flat = jnp.pad(x_flat, ((0, rows_pad - rows), (0, hw_pad - HW)))
    if hw_pad != HW:
        M_np = np.pad(M_np, ((0, hw_pad - HW), (0, 0)))
    M = jnp.asarray(M_np, dtype=x.dtype)          # exact 0/1 values in any dtype
    inv = jnp.asarray(inv_np)                     # f32 (1, OH*OW)

    # --- VMEM limit from the actual per-step footprint (+25% margin) ---------
    footprint = (2 * rt * k_tile * xbytes
                 + 2 * k_tile * OHOW * xbytes
                 + 2 * rt * OHOW * xbytes
                 + 2 * OHOW * 4
                 + (rt * OHOW * 4 if num_k > 1 else 0))
    vmem_limit = int(footprint * 1.25) + (2 << 20)
    vmem_limit = max(32 << 20, min(vmem_limit, per_core_cap))

    # f32 inputs: full-precision MXU passes so we match F.adaptive_avg_pool2d
    # (the kernel is HBM-bound, so the extra passes are essentially free).
    precision = (jax.lax.Precision.HIGHEST
                 if x.dtype == jnp.float32 else jax.lax.Precision.DEFAULT)

    cost = pl.CostEstimate(
        flops=2 * rows_pad * hw_pad * OHOW,
        transcendentals=0,
        bytes_accessed=(rows_pad * hw_pad
                        + num_row_tiles * hw_pad * OHOW
                        + rows_pad * OHOW) * xbytes,
    )

    if num_k == 1:
        kernel = functools.partial(_pool_kernel_single, precision=precision)
        grid = (num_row_tiles,)
        in_specs = [
            pl.BlockSpec((rt, k_tile), lambda i: (i, 0)),       # x slab
            pl.BlockSpec((k_tile, OHOW), lambda i: (0, 0)),     # membership
            pl.BlockSpec((1, OHOW), lambda i: (0, 0)),          # 1/k scale
        ]
        out_specs = pl.BlockSpec((rt, OHOW), lambda i: (i, 0))
        scratch_shapes = []
        dim_sem = ("parallel",)
    else:
        kernel = functools.partial(_pool_kernel_kblocked, precision=precision)
        grid = (num_row_tiles, num_k)
        in_specs = [
            pl.BlockSpec((rt, k_tile), lambda i, k: (i, k)),    # x slab
            pl.BlockSpec((k_tile, OHOW), lambda i, k: (k, 0)),  # membership
            pl.BlockSpec((1, OHOW), lambda i, k: (0, 0)),       # 1/k scale
        ]
        out_specs = pl.BlockSpec((rt, OHOW), lambda i, k: (i, 0))
        scratch_shapes = [pltpu.VMEM((rt, OHOW), jnp.float32)]
        dim_sem = ("parallel", "arbitrary")

    out_flat = pl.pallas_call(
        kernel,
        out_shape=jax.ShapeDtypeStruct((rows_pad, OHOW), x.dtype),
        grid_spec=pltpu.PrefetchScalarGridSpec(
            num_scalar_prefetch=0,
            grid=grid,
            in_specs=in_specs,
            out_specs=out_specs,
            scratch_shapes=scratch_shapes,
        ),
        compiler_params=pltpu.CompilerParams(
            dimension_semantics=dim_sem,
            vmem_limit_bytes=int(vmem_limit),
        ),
        cost_estimate=cost,
    )(x_flat, M, inv)

    return out_flat[:rows].reshape(N, C, OH, OW)


if __name__ == "__main__":
    key = jax.random.PRNGKey(0)

    # Check 1: canonical small shape (divisible windows -> simple reference).
    # Shapes are naturally lane-aligned (HW=256, rows=8), so no pad copy.
    N, C, H, W = 2, 4, 16, 16
    output_size = (4, 4)
    x = jax.random.normal(key, (N, C, H, W), dtype=jnp.float32)
    out = jax.block_until_ready(log_quantized_adaptive_avg_pool2d(x, output_size))
    ref = x.reshape(N, C, output_size[0], H // output_size[0],
                    output_size[1], W // output_size[1]).mean(axis=(3, 5))
    assert out.shape == (N, C, output_size[0], output_size[1])
    assert jnp.allclose(out, ref, atol=1e-5, rtol=1e-5)

    # Check 2: rows (N*C) not a multiple of the sublane alignment and a
    # non-square pooling -> exercises the minimal pad-and-slice path.
    x2 = jax.random.normal(jax.random.PRNGKey(0), (1, 3, 12, 10), dtype=jnp.float32)
    out2 = jax.block_until_ready(log_quantized_adaptive_avg_pool2d(x2, (4, 5)))
    ref2 = x2.reshape(1, 3, 4, 3, 5, 2).mean(axis=(3, 5))
    assert out2.shape == (1, 3, 4, 5)
    assert jnp.allclose(out2, ref2, atol=1e-5, rtol=1e-5)

    print("KERNEL_OK")
</pallas_src>

<mosaic_0001>
module attributes {stable_mosaic.version = 11 : i64} {
  func.func @_pool_kernel_single(%arg0: i32, %arg1: memref<8x256xf32, #tpu.memory_space<vmem>>, %arg2: memref<256x16xf32, #tpu.memory_space<vmem>>, %arg3: memref<1x16xf32, #tpu.memory_space<vmem>>, %arg4: memref<8x16xf32, #tpu.memory_space<vmem>>) attributes {dimension_semantics = [#tpu.dimension_semantics<parallel>], iteration_bounds = array<i64: 1>, scalar_prefetch = 0 : i64, scratch_operands = 0 : i64, tpu.core_type = #tpu.core_type<tc>, window_params = [{transform_indices = @transform_0, window_bounds = array<i64: 8, 256>}, {pipeline_mode = #tpu.pipeline_mode<synchronous>, transform_indices = @transform_1, window_bounds = array<i64: 256, 16>}, {pipeline_mode = #tpu.pipeline_mode<synchronous>, transform_indices = @transform_2, window_bounds = array<i64: 1, 16>}, {transform_indices = @transform_3, window_bounds = array<i64: 8, 16>}]} {
    %c0 = arith.constant 0 : index
    %c0_0 = arith.constant 0 : index
    %0 = vector.load %arg1[%c0, %c0_0] : memref<8x256xf32, #tpu.memory_space<vmem>>, vector<8x256xf32>
    %c0_1 = arith.constant 0 : index
    %c0_2 = arith.constant 0 : index
    %1 = vector.load %arg2[%c0_1, %c0_2] : memref<256x16xf32, #tpu.memory_space<vmem>>, vector<256x16xf32>
    %cst = arith.constant dense<0.000000e+00> : vector<8x16xf32>
    %2 = tpu.matmul %0, %1, %cst {dimension_numbers = #tpu.dot_dimension_numbers<[1], [0], [0], [1], [0, 0, 1, 1], [], []>, precision = #tpu.contract_precision<fp32>} : vector<8x256xf32>, vector<256x16xf32>, vector<8x16xf32> -> vector<8x16xf32>
    %c0_3 = arith.constant 0 : index
    %c0_4 = arith.constant 0 : index
    %3 = vector.load %arg3[%c0_3, %c0_4] : memref<1x16xf32, #tpu.memory_space<vmem>>, vector<1x16xf32>
    %4 = vector.broadcast %3 : vector<1x16xf32> to vector<8x16xf32>
    %5 = arith.mulf %2, %4 : vector<8x16xf32>
    %c0_5 = arith.constant 0 : index
    %c0_6 = arith.constant 0 : index
    %6 = vector.load %arg4[%c0_5, %c0_6] : memref<8x16xf32, #tpu.memory_space<vmem>>, vector<8x16xf32>
    tpu.vector_store %arg4[%c0_5, %c0_6], %5 {strides = array<i32>} : memref<8x16xf32, #tpu.memory_space<vmem>>, vector<8x16xf32>,
    return
  }
  func.func @transform_0(%arg0: i32) -> (i32, i32) {
    %c0_i32 = arith.constant 0 : i32
    %c0_i32_0 = arith.constant 0 : i32
    return %arg0, %c0_i32 : i32, i32
  }
  func.func @transform_1(%arg0: i32) -> (i32, i32) {
    %c0_i32 = arith.constant 0 : i32
    %c0_i32_0 = arith.constant 0 : i32
    %c0_i32_1 = arith.constant 0 : i32
    return %c0_i32, %c0_i32_0 : i32, i32
  }
  func.func @transform_2(%arg0: i32) -> (i32, i32) {
    %c0_i32 = arith.constant 0 : i32
    %c0_i32_0 = arith.constant 0 : i32
    %c0_i32_1 = arith.constant 0 : i32
    return %c0_i32, %c0_i32_0 : i32, i32
  }
  func.func @transform_3(%arg0: i32) -> (i32, i32) {
    %c0_i32 = arith.constant 0 : i32
    %c0_i32_0 = arith.constant 0 : i32
    return %arg0, %c0_i32 : i32, i32
  }
}

</mosaic_0001>

<llo_original>
// kernel: tpu_custom_call.1
$region0: #{tpu_custom_call.1}
  #allocation0 [shape = 'u32[]', space=smem, size = 0x4, offset = 0x4, fixed_abs, tag = 'smem constant byte address 0x4 - core index']
  #allocation1 [shape = 'u32[72,128]{1,0:T(1,128)}', space=vmem, size = 0x9000, scoped, tag = 'internal scratch']
  %s0 = inlined_call_operand.vmem [shape: f32[8,256], index: 0, kind: input, shape index: {}]
  %s1 = inlined_call_operand.vmem [shape: f32[256,16], index: 1, kind: input, shape index: {}]
  %s2 = inlined_call_operand.vmem [shape: f32[1,16], index: 2, kind: input, shape index: {}]
  %s3 = inlined_call_operand.hbm [shape: f32[8,16], index: 3, kind: output, shape index: {}]
  %s4 = sld [smem:[#allocation0]]
  $region22: #{tpu_custom_call.1} parent=0
    _
  %s6 = ssub.s32 1, %s4
  %s7 = scalar_select 0, %s6, %s4
  $region1: #{tpu_custom_call.1} parent=0
    #allocation2 [shape = 'u8[4096]{0}', space=vmem, size = 0x1000, scoped, tag = 'output window, operand 0, single buffered']
    #allocation3 [shape = 's32[1]{0}', space=sflag, size = 0x4, scoped, tag = 'scoped memory for tpu_custom_call.1']
    %8 = vsyncpa [#allocation3], 0
    // Predicated region
    $region2: #{tpu_custom_call.1} parent=1 // pred_check
      _
    $region3: #{tpu_custom_call.1} parent=1 // pred_check_branch
      %10 = sbr.rel (0) target = $region5
    $region4: #{tpu_custom_call.1} parent=1 // pred_region
      _
    $region5: #{tpu_custom_call.1} parent=1 // pred_fallthru
      _
    // Predicated region
    $region6: #{tpu_custom_call.1} parent=1 // pred_check
      _
    $region7: #{tpu_custom_call.1} parent=1 // pred_check_branch
      %12 = sbr.rel (0) target = $region9
    $region8: #{tpu_custom_call.1} parent=1 // pred_region
      _
    $region9: #{tpu_custom_call.1} parent=1 // pred_fallthru
      _
    // Predicated region
    $region10: #{tpu_custom_call.1} parent=1 // pred_check
      _
    $region11: #{tpu_custom_call.1} parent=1 // pred_check_branch
      %14 = sbr.rel (0) target = $region13
    $region12: #{tpu_custom_call.1} parent=1 // pred_region
      _
    $region13: #{tpu_custom_call.1} parent=1 // pred_fallthru
      _
    %v15 = vld [vmem:[%s0] sm:$0xff]
    %v16 = vld [vmem:[%s0 + $0x8] sm:$0xff]
    %v17 = vld [vmem:[%s1] sm:$0xff]
    %v18 = vld [vmem:[%s1 + $0x8] sm:$0xff]
    %v19 = vld [vmem:[%s1 + $0x10] sm:$0xff]
    %v20 = vld [vmem:[%s1 + $0x18] sm:$0xff]
    %v21 = vld [vmem:[%s1 + $0x20] sm:$0xff]
    %v22 = vld [vmem:[%s1 + $0x28] sm:$0xff]
    %v23 = vld [vmem:[%s1 + $0x30] sm:$0xff]
    %v24 = vld [vmem:[%s1 + $0x38] sm:$0xff]
    %v25 = vld [vmem:[%s1 + $0x40] sm:$0xff]
    %v26 = vld [vmem:[%s1 + $0x48] sm:$0xff]
    %v27 = vld [vmem:[%s1 + $0x50] sm:$0xff]
    %v28 = vld [vmem:[%s1 + $0x58] sm:$0xff]
    %v29 = vld [vmem:[%s1 + $0x60] sm:$0xff]
    %v30 = vld [vmem:[%s1 + $0x68] sm:$0xff]
    %v31 = vld [vmem:[%s1 + $0x70] sm:$0xff]
    %v32 = vld [vmem:[%s1 + $0x78] sm:$0xff]
    %v33 = vld [vmem:[%s1 + $0x80] sm:$0xff]
    %v34 = vld [vmem:[%s1 + $0x88] sm:$0xff]
    %v35 = vld [vmem:[%s1 + $0x90] sm:$0xff]
    %v36 = vld [vmem:[%s1 + $0x98] sm:$0xff]
    %v37 = vld [vmem:[%s1 + $0xa0] sm:$0xff]
    %v38 = vld [vmem:[%s1 + $0xa8] sm:$0xff]
    %v39 = vld [vmem:[%s1 + $0xb0] sm:$0xff]
    %v40 = vld [vmem:[%s1 + $0xb8] sm:$0xff]
    %v41 = vld [vmem:[%s1 + $0xc0] sm:$0xff]
    %v42 = vld [vmem:[%s1 + $0xc8] sm:$0xff]
    %v43 = vld [vmem:[%s1 + $0xd0] sm:$0xff]
    %v44 = vld [vmem:[%s1 + $0xd8] sm:$0xff]
    %v45 = vld [vmem:[%s1 + $0xe0] sm:$0xff]
    %v46 = vld [vmem:[%s1 + $0xe8] sm:$0xff]
    %v47 = vld [vmem:[%s1 + $0xf0] sm:$0xff]
    %v48 = vld [vmem:[%s1 + $0xf8] sm:$0xff]
    %v49 = vand.u32 %v32, 4294901760
    %50 = vmatpush.msra.mxu0 %v49
    %v51 = vand.u32 %v31, 4294901760
    %52 = vmatpush.msra.mxu0 %v51
    %v53 = vand.u32 %v30, 4294901760
    %54 = vmatpush.msra.mxu0 %v53
    %v55 = vand.u32 %v29, 4294901760
    %56 = vmatpush.msra.mxu0 %v55
    %v57 = vand.u32 %v28, 4294901760
    %58 = vmatpush.msra.mxu0 %v57
    %v59 = vand.u32 %v27, 4294901760
    %60 = vmatpush.msra.mxu0 %v59
    %v61 = vand.u32 %v26, 4294901760
    %62 = vmatpush.msra.mxu0 %v61
    %v63 = vand.u32 %v25, 4294901760
    %64 = vmatpush.msra.mxu0 %v63
    %v65 = vand.u32 %v24, 4294901760
    %66 = vmatpush.msra.mxu0 %v65
    %v67 = vand.u32 %v23, 4294901760
    %68 = vmatpush.msra.mxu0 %v67
    %v69 = vand.u32 %v22, 4294901760
    %70 = vmatpush.msra.mxu0 %v69
    %v71 = vand.u32 %v21, 4294901760
    %72 = vmatpush.msra.mxu0 %v71
    %v73 = vand.u32 %v20, 4294901760
    %74 = vmatpush.msra.mxu0 %v73
    %v75 = vand.u32 %v19, 4294901760
    %76 = vmatpush.msra.mxu0 %v75
    %v77 = vand.u32 %v18, 4294901760
    %78 = vmatpush.msra.mxu0 %v77
    %v79 = vand.u32 %v17, 4294901760
    %80 = vmatpush.msra.mxu0 %v79
    %v81 = vand.u32 %v15, 4294901760
    %v82 = vsub.f32 %v15, %v81
    %v83 = vand.u32 %v82, 4294901760
    %v84 = vsub.f32 %v82, %v83
    %v85 = vand.u32 %v84, 4294901760
    %86 = vmatmul.f32.gmra.mxu0 %v85
    %v87 = vpop.f32.mrf.mxu0
    %v88 = vadd.f32 0.0, %v87
    %89 = vdwg.mxu0
    %v90 = vand.u32 %v32, 4294901760
    %v91 = vsub.f32 %v32, %v90
    %v92 = vand.u32 %v91, 4294901760
    %v93 = vsub.f32 %v91, %v92
    %v94 = vand.u32 %v93, 4294901760
    %95 = vmatpush.msra.mxu0 %v94
    %v96 = vand.u32 %v31, 4294901760
    %v97 = vsub.f32 %v31, %v96
    %v98 = vand.u32 %v97, 4294901760
    %v99 = vsub.f32 %v97, %v98
    %v100 = vand.u32 %v99, 4294901760
    %101 = vmatpush.msra.mxu0 %v100
    %v102 = vand.u32 %v30, 4294901760
    %v103 = vsub.f32 %v30, %v102
    %v104 = vand.u32 %v103, 4294901760
    %v105 = vsub.f32 %v103, %v104
    %v106 = vand.u32 %v105, 4294901760
    %107 = vmatpush.msra.mxu0 %v106
    %v108 = vand.u32 %v29, 4294901760
    %v109 = vsub.f32 %v29, %v108
    %v110 = vand.u32 %v109, 4294901760
    %v111 = vsub.f32 %v109, %v110
    %v112 = vand.u32 %v111, 4294901760
    %113 = vmatpush.msra.mxu0 %v112
    %v114 = vand.u32 %v28, 4294901760
    %v115 = vsub.f32 %v28, %v114
    %v116 = vand.u32 %v115, 4294901760
    %v117 = vsub.f32 %v115, %v116
    %v118 = vand.u32 %v117, 4294901760
    %119 = vmatpush.msra.mxu0 %v118
    %v120 = vand.u32 %v27, 4294901760
    %v121 = vsub.f32 %v27, %v120
    %v122 = vand.u32 %v121, 4294901760
    %v123 = vsub.f32 %v121, %v122
    %v124 = vand.u32 %v123, 4294901760
    %125 = vmatpush.msra.mxu0 %v124
    %v126 = vand.u32 %v26, 4294901760
    %v127 = vsub.f32 %v26, %v126
    %v128 = vand.u32 %v127, 4294901760
    %v129 = vsub.f32 %v127, %v128
    %v130 = vand.u32 %v129, 4294901760
    %131 = vmatpush.msra.mxu0 %v130
    %v132 = vand.u32 %v25, 4294901760
    %v133 = vsub.f32 %v25, %v132
    %v134 = vand.u32 %v133, 4294901760
    %v135 = vsub.f32 %v133, %v134
    %v136 = vand.u32 %v135, 4294901760
    %137 = vmatpush.msra.mxu0 %v136
    %v138 = vand.u32 %v24, 4294901760
    %v139 = vsub.f32 %v24, %v138
    %v140 = vand.u32 %v139, 4294901760
    %v141 = vsub.f32 %v139, %v140
    %v142 = vand.u32 %v141, 4294901760
    %143 = vmatpush.msra.mxu0 %v142
    %v144 = vand.u32 %v23, 4294901760
    %v145 = vsub.f32 %v23, %v144
    %v146 = vand.u32 %v145, 4294901760
    %v147 = vsub.f32 %v145, %v146
    %v148 = vand.u32 %v147, 4294901760
    %149 = vmatpush.msra.mxu0 %v148
    %v150 = vand.u32 %v22, 4294901760
    %v151 = vsub.f32 %v22, %v150
    %v152 = vand.u32 %v151, 4294901760
    %v153 = vsub.f32 %v151, %v152
    %v154 = vand.u32 %v153, 4294901760
    %155 = vmatpush.msra.mxu0 %v154
    %v156 = vand.u32 %v21, 4294901760
    %v157 = vsub.f32 %v21, %v156
    %v158 = vand.u32 %v157, 4294901760
    %v159 = vsub.f32 %v157, %v158
    %v160 = vand.u32 %v159, 4294901760
    %161 = vmatpush.msra.mxu0 %v160
    %v162 = vand.u32 %v20, 4294901760
    %v163 = vsub.f32 %v20, %v162
    %v164 = vand.u32 %v163, 4294901760
    %v165 = vsub.f32 %v163, %v164
    %v166 = vand.u32 %v165, 4294901760
    %167 = vmatpush.msra.mxu0 %v166
    %v168 = vand.u32 %v19, 4294901760
    %v169 = vsub.f32 %v19, %v168
    %v170 = vand.u32 %v169, 4294901760
    %v171 = vsub.f32 %v169, %v170
    %v172 = vand.u32 %v171, 4294901760
    %173 = vmatpush.msra.mxu0 %v172
    %v174 = vand.u32 %v18, 4294901760
    %v175 = vsub.f32 %v18, %v174
    %v176 = vand.u32 %v175, 4294901760
    %v177 = vsub.f32 %v175, %v176
    %v178 = vand.u32 %v177, 4294901760
    %179 = vmatpush.msra.mxu0 %v178
    %v180 = vand.u32 %v17, 4294901760
    %v181 = vsub.f32 %v17, %v180
    %v182 = vand.u32 %v181, 4294901760
    %v183 = vsub.f32 %v181, %v182
    %v184 = vand.u32 %v183, 4294901760
    %185 = vmatpush.msra.mxu0 %v184
    %v186 = vand.u32 %v15, 4294901760
    %187 = vmatmul.f32.gmra.mxu0 %v186
    %v188 = vpop.f32.mrf.mxu0
    %v189 = vadd.f32 %v88, %v188
    %190 = vdwg.mxu0
    %v191 = vand.u32 %v32, 4294901760
    %v192 = vsub.f32 %v32, %v191
    %193 = vmatpush.msra.mxu0 %v192
    %v194 = vand.u32 %v31, 4294901760
    %v195 = vsub.f32 %v31, %v194
    %196 = vmatpush.msra.mxu0 %v195
    %v197 = vand.u32 %v30, 4294901760
    %v198 = vsub.f32 %v30, %v197
    %199 = vmatpush.msra.mxu0 %v198
    %v200 = vand.u32 %v29, 4294901760
    %v201 = vsub.f32 %v29, %v200
    %202 = vmatpush.msra.mxu0 %v201
    %v203 = vand.u32 %v28, 4294901760
    %v204 = vsub.f32 %v28, %v203
    %205 = vmatpush.msra.mxu0 %v204
    %v206 = vand.u32 %v27, 4294901760
    %v207 = vsub.f32 %v27, %v206
    %208 = vmatpush.msra.mxu0 %v207
    %v209 = vand.u32 %v26, 4294901760
    %v210 = vsub.f32 %v26, %v209
    %211 = vmatpush.msra.mxu0 %v210
    %v212 = vand.u32 %v25, 4294901760
    %v213 = vsub.f32 %v25, %v212
    %214 = vmatpush.msra.mxu0 %v213
    %v215 = vand.u32 %v24, 4294901760
    %v216 = vsub.f32 %v24, %v215
    %217 = vmatpush.msra.mxu0 %v216
    %v218 = vand.u32 %v23, 4294901760
    %v219 = vsub.f32 %v23, %v218
    %220 = vmatpush.msra.mxu0 %v219
    %v221 = vand.u32 %v22, 4294901760
    %v222 = vsub.f32 %v22, %v221
    %223 = vmatpush.msra.mxu0 %v222
    %v224 = vand.u32 %v21, 4294901760
    %v225 = vsub.f32 %v21, %v224
    %226 = vmatpush.msra.mxu0 %v225
    %v227 = vand.u32 %v20, 4294901760
    %v228 = vsub.f32 %v20, %v227
    %229 = vmatpush.msra.mxu0 %v228
    %v230 = vand.u32 %v19, 4294901760
    %v231 = vsub.f32 %v19, %v230
    %232 = vmatpush.msra.mxu0 %v231
    %v233 = vand.u32 %v18, 4294901760
    %v234 = vsub.f32 %v18, %v233
    %235 = vmatpush.msra.mxu0 %v234
    %v236 = vand.u32 %v17, 4294901760
    %v237 = vsub.f32 %v17, %v236
    %238 = vmatpush.msra.mxu0 %v237
    %v239 = vand.u32 %v15, 4294901760
    %v240 = vsub.f32 %v15, %v239
    %241 = vmatmul.f32.gmra.mxu0 %v240
    %v242 = vpop.f32.mrf.mxu0
    %v243 = vadd.f32 %v189, %v242
    %244 = vdwg.mxu0
    %v245 = vand.u32 %v32, 4294901760
    %246 = vmatpush.msra.mxu0 %v245
    %v247 = vand.u32 %v31, 4294901760
    %248 = vmatpush.msra.mxu0 %v247
    %v249 = vand.u32 %v30, 4294901760
    %250 = vmatpush.msra.mxu0 %v249
    %v251 = vand.u32 %v29, 4294901760
    %252 = vmatpush.msra.mxu0 %v251
    %v253 = vand.u32 %v28, 4294901760
    %254 = vmatpush.msra.mxu0 %v253
    %v255 = vand.u32 %v27, 4294901760
    %256 = vmatpush.msra.mxu0 %v255
    %v257 = vand.u32 %v26, 4294901760
    %258 = vmatpush.msra.mxu0 %v257
    %v259 = vand.u32 %v25, 4294901760
    %260 = vmatpush.msra.mxu0 %v259
    %v261 = vand.u32 %v24, 4294901760
    %262 = vmatpush.msra.mxu0 %v261
    %v263 = vand.u32 %v23, 4294901760
    %264 = vmatpush.msra.mxu0 %v263
    %v265 = vand.u32 %v22, 4294901760
    %266 = vmatpush.msra.mxu0 %v265
    %v267 = vand.u32 %v21, 4294901760
    %268 = vmatpush.msra.mxu0 %v267
    %v269 = vand.u32 %v20, 4294901760
    %270 = vmatpush.msra.mxu0 %v269
    %v271 = vand.u32 %v19, 4294901760
    %272 = vmatpush.msra.mxu0 %v271
    %v273 = vand.u32 %v18, 4294901760
    %274 = vmatpush.msra.mxu0 %v273
    %v275 = vand.u32 %v17, 4294901760
    %276 = vmatpush.msra.mxu0 %v275
    %v277 = vand.u32 %v15, 4294901760
    %v278 = vsub.f32 %v15, %v277
    %v279 = vand.u32 %v278, 4294901760
    %280 = vmatmul.f32.gmra.mxu0 %v279
    %v281 = vpop.f32.mrf.mxu0
    %v282 = vadd.f32 %v243, %v281
    %283 = vdwg.mxu0
    %v284 = vand.u32 %v32, 4294901760
    %v285 = vsub.f32 %v32, %v284
    %v286 = vand.u32 %v285, 4294901760
    %287 = vmatpush.msra.mxu0 %v286
    %v288 = vand.u32 %v31, 4294901760
    %v289 = vsub.f32 %v31, %v288
    %v290 = vand.u32 %v289, 4294901760
    %291 = vmatpush.msra.mxu0 %v290
    %v292 = vand.u32 %v30, 4294901760
    %v293 = vsub.f32 %v30, %v292
    %v294 = vand.u32 %v293, 4294901760
    %295 = vmatpush.msra.mxu0 %v294
    %v296 = vand.u32 %v29, 4294901760
    %v297 = vsub.f32 %v29, %v296
    %v298 = vand.u32 %v297, 4294901760
    %299 = vmatpush.msra.mxu0 %v298
    %v300 = vand.u32 %v28, 4294901760
    %v301 = vsub.f32 %v28, %v300
    %v302 = vand.u32 %v301, 4294901760
    %303 = vmatpush.msra.mxu0 %v302
    %v304 = vand.u32 %v27, 4294901760
    %v305 = vsub.f32 %v27, %v304
    %v306 = vand.u32 %v305, 4294901760
    %307 = vmatpush.msra.mxu0 %v306
    %v308 = vand.u32 %v26, 4294901760
    %v309 = vsub.f32 %v26, %v308
    %v310 = vand.u32 %v309, 4294901760
    %311 = vmatpush.msra.mxu0 %v310
    %v312 = vand.u32 %v25, 4294901760
    %v313 = vsub.f32 %v25, %v312
    %v314 = vand.u32 %v313, 4294901760
    %315 = vmatpush.msra.mxu0 %v314
    %v316 = vand.u32 %v24, 4294901760
    %v317 = vsub.f32 %v24, %v316
    %v318 = vand.u32 %v317, 4294901760
    %319 = vmatpush.msra.mxu0 %v318
    %v320 = vand.u32 %v23, 4294901760
    %v321 = vsub.f32 %v23, %v320
    %v322 = vand.u32 %v321, 4294901760
    %323 = vmatpush.msra.mxu0 %v322
    %v324 = vand.u32 %v22, 4294901760
    %v325 = vsub.f32 %v22, %v324
    %v326 = vand.u32 %v325, 4294901760
    %327 = vmatpush.msra.mxu0 %v326
    %v328 = vand.u32 %v21, 4294901760
    %v329 = vsub.f32 %v21, %v328
    %v330 = vand.u32 %v329, 4294901760
    %331 = vmatpush.msra.mxu0 %v330
    %v332 = vand.u32 %v20, 4294901760
    %v333 = vsub.f32 %v20, %v332
    %v334 = vand.u32 %v333, 4294901760
    %335 = vmatpush.msra.mxu0 %v334
    %v336 = vand.u32 %v19, 4294901760
    %v337 = vsub.f32 %v19, %v336
    %v338 = vand.u32 %v337, 4294901760
    %339 = vmatpush.msra.mxu0 %v338
    %v340 = vand.u32 %v18, 4294901760
    %v341 = vsub.f32 %v18, %v340
    %v342 = vand.u32 %v341, 4294901760
    %343 = vmatpush.msra.mxu0 %v342
    %v344 = vand.u32 %v17, 4294901760
    %v345 = vsub.f32 %v17, %v344
    %v346 = vand.u32 %v345, 4294901760
    %347 = vmatpush.msra.mxu0 %v346
    %v348 = vand.u32 %v15, 4294901760
    %349 = vmatmul.f32.gmra.mxu0 %v348
    %v350 = vpop.f32.mrf.mxu0
    %v351 = vadd.f32 %v282, %v350
    %352 = vdwg.mxu0
    %v353 = vand.u32 %v32, 4294901760
    %354 = vmatpush.msra.mxu0 %v353
    %v355 = vand.u32 %v31, 4294901760
    %356 = vmatpush.msra.mxu0 %v355
    %v357 = vand.u32 %v30, 4294901760
    %358 = vmatpush.msra.mxu0 %v357
    %v359 = vand.u32 %v29, 4294901760
    %360 = vmatpush.msra.mxu0 %v359
    %v361 = vand.u32 %v28, 4294901760
    %362 = vmatpush.msra.mxu0 %v361
    %v363 = vand.u32 %v27, 4294901760
    %364 = vmatpush.msra.mxu0 %v363
    %v365 = vand.u32 %v26, 4294901760
    %366 = vmatpush.msra.mxu0 %v365
    %v367 = vand.u32 %v25, 4294901760
    %368 = vmatpush.msra.mxu0 %v367
    %v369 = vand.u32 %v24, 4294901760
    %370 = vmatpush.msra.mxu0 %v369
    %v371 = vand.u32 %v23, 4294901760
    %372 = vmatpush.msra.mxu0 %v371
    %v373 = vand.u32 %v22, 4294901760
    %374 = vmatpush.msra.mxu0 %v373
    %v375 = vand.u32 %v21, 4294901760
    %376 = vmatpush.msra.mxu0 %v375
    %v377 = vand.u32 %v20, 4294901760
    %378 = vmatpush.msra.mxu0 %v377
    %v379 = vand.u32 %v19, 4294901760
    %380 = vmatpush.msra.mxu0 %v379
    %v381 = vand.u32 %v18, 4294901760
    %382 = vmatpush.msra.mxu0 %v381
    %v383 = vand.u32 %v17, 4294901760
    %384 = vmatpush.msra.mxu0 %v383
    %v385 = vand.u32 %v15, 4294901760
    %386 = vmatmul.f32.gmra.mxu0 %v385
    %v387 = vpop.f32.mrf.mxu0
    %v388 = vadd.f32 %v351, %v387
    %389 = vdwg.mxu0
    %v390 = vand.u32 %v48, 4294901760
    %391 = vmatpush.msra.mxu0 %v390
    %v392 = vand.u32 %v47, 4294901760
    %393 = vmatpush.msra.mxu0 %v392
    %v394 = vand.u32 %v46, 4294901760
    %395 = vmatpush.msra.mxu0 %v394
    %v396 = vand.u32 %v45, 4294901760
    %397 = vmatpush.msra.mxu0 %v396
    %v398 = vand.u32 %v44, 4294901760
    %399 = vmatpush.msra.mxu0 %v398
    %v400 = vand.u32 %v43, 4294901760
    %401 = vmatpush.msra.mxu0 %v400
    %v402 = vand.u32 %v42, 4294901760
    %403 = vmatpush.msra.mxu0 %v402
    %v404 = vand.u32 %v41, 4294901760
    %405 = vmatpush.msra.mxu0 %v404
    %v406 = vand.u32 %v40, 4294901760
    %407 = vmatpush.msra.mxu0 %v406
    %v408 = vand.u32 %v39, 4294901760
    %409 = vmatpush.msra.mxu0 %v408
    %v410 = vand.u32 %v38, 4294901760
    %411 = vmatpush.msra.mxu0 %v410
    %v412 = vand.u32 %v37, 4294901760
    %413 = vmatpush.msra.mxu0 %v412
    %v414 = vand.u32 %v36, 4294901760
    %415 = vmatpush.msra.mxu0 %v414
    %v416 = vand.u32 %v35, 4294901760
    %417 = vmatpush.msra.mxu0 %v416
    %v418 = vand.u32 %v34, 4294901760
    %419 = vmatpush.msra.mxu0 %v418
    %v420 = vand.u32 %v33, 4294901760
    %421 = vmatpush.msra.mxu0 %v420
    %v422 = vand.u32 %v16, 4294901760
    %v423 = vsub.f32 %v16, %v422
    %v424 = vand.u32 %v423, 4294901760
    %v425 = vsub.f32 %v423, %v424
    %v426 = vand.u32 %v425, 4294901760
    %427 = vmatmul.f32.gmra.mxu0 %v426
    %v428 = vpop.f32.mrf.mxu0
    %v429 = vadd.f32 %v388, %v428
    %430 = vdwg.mxu0
    %v431 = vand.u32 %v48, 4294901760
    %v432 = vsub.f32 %v48, %v431
    %v433 = vand.u32 %v432, 4294901760
    %v434 = vsub.f32 %v432, %v433
    %v435 = vand.u32 %v434, 4294901760
    %436 = vmatpush.msra.mxu0 %v435
    %v437 = vand.u32 %v47, 4294901760
    %v438 = vsub.f32 %v47, %v437
    %v439 = vand.u32 %v438, 4294901760
    %v440 = vsub.f32 %v438, %v439
    %v441 = vand.u32 %v440, 4294901760
    %442 = vmatpush.msra.mxu0 %v441
    %v443 = vand.u32 %v46, 4294901760
    %v444 = vsub.f32 %v46, %v443
    %v445 = vand.u32 %v444, 4294901760
    %v446 = vsub.f32 %v444, %v445
    %v447 = vand.u32 %v446, 4294901760
    %448 = vmatpush.msra.mxu0 %v447
    %v449 = vand.u32 %v45, 4294901760
    %v450 = vsub.f32 %v45, %v449
    %v451 = vand.u32 %v450, 4294901760
    %v452 = vsub.f32 %v450, %v451
    %v453 = vand.u32 %v452, 4294901760
    %454 = vmatpush.msra.mxu0 %v453
    %v455 = vand.u32 %v44, 4294901760
    %v456 = vsub.f32 %v44, %v455
    %v457 = vand.u32 %v456, 4294901760
    %v458 = vsub.f32 %v456, %v457
    %v459 = vand.u32 %v458, 4294901760
    %460 = vmatpush.msra.mxu0 %v459
    %v461 = vand.u32 %v43, 4294901760
    %v462 = vsub.f32 %v43, %v461
    %v463 = vand.u32 %v462, 4294901760
    %v464 = vsub.f32 %v462, %v463
    %v465 = vand.u32 %v464, 4294901760
    %466 = vmatpush.msra.mxu0 %v465
    %v467 = vand.u32 %v42, 4294901760
    %v468 = vsub.f32 %v42, %v467
    %v469 = vand.u32 %v468, 4294901760
    %v470 = vsub.f32 %v468, %v469
    %v471 = vand.u32 %v470, 4294901760
    %472 = vmatpush.msra.mxu0 %v471
    %v473 = vand.u32 %v41, 4294901760
    %v474 = vsub.f32 %v41, %v473
    %v475 = vand.u32 %v474, 4294901760
    %v476 = vsub.f32 %v474, %v475
    %v477 = vand.u32 %v476, 4294901760
    %478 = vmatpush.msra.mxu0 %v477
    %v479 = vand.u32 %v40, 4294901760
    %v480 = vsub.f32 %v40, %v479
    %v481 = vand.u32 %v480, 4294901760
    %v482 = vsub.f32 %v480, %v481
    %v483 = vand.u32 %v482, 4294901760
    %484 = vmatpush.msra.mxu0 %v483
    %v485 = vand.u32 %v39, 4294901760
    %v486 = vsub.f32 %v39, %v485
    %v487 = vand.u32 %v486, 4294901760
    %v488 = vsub.f32 %v486, %v487
    %v489 = vand.u32 %v488, 4294901760
    %490 = vmatpush.msra.mxu0 %v489
    %v491 = vand.u32 %v38, 4294901760
    %v492 = vsub.f32 %v38, %v491
    %v493 = vand.u32 %v492, 4294901760
    %v494 = vsub.f32 %v492, %v493
    %v495 = vand.u32 %v494, 4294901760
    %496 = vmatpush.msra.mxu0 %v495
    %v497 = vand.u32 %v37, 4294901760
    %v498 = vsub.f32 %v37, %v497
    %v499 = vand.u32 %v498, 4294901760
    %v500 = vsub.f32 %v498, %v499
    %v501 = vand.u32 %v500, 4294901760
    %502 = vmatpush.msra.mxu0 %v501
    %v503 = vand.u32 %v36, 4294901760
    %v504 = vsub.f32 %v36, %v503
    %v505 = vand.u32 %v504, 4294901760
    %v506 = vsub.f32 %v504, %v505
    %v507 = vand.u32 %v506, 4294901760
    %508 = vmatpush.msra.mxu0 %v507
    %v509 = vand.u32 %v35, 4294901760
    %v510 = vsub.f32 %v35, %v509
    %v511 = vand.u32 %v510, 4294901760
    %v512 = vsub.f32 %v510, %v511
    %v513 = vand.u32 %v512, 4294901760
    %514 = vmatpush.msra.mxu0 %v513
    %v515 = vand.u32 %v34, 4294901760
    %v516 = vsub.f32 %v34, %v515
    %v517 = vand.u32 %v516, 4294901760
    %v518 = vsub.f32 %v516, %v517
    %v519 = vand.u32 %v518, 4294901760
    %520 = vmatpush.msra.mxu0 %v519
    %v521 = vand.u32 %v33, 4294901760
    %v522 = vsub.f32 %v33, %v521
    %v523 = vand.u32 %v522, 4294901760
    %v524 = vsub.f32 %v522, %v523
    %v525 = vand.u32 %v524, 4294901760
    %526 = vmatpush.msra.mxu0 %v525
    %v527 = vand.u32 %v16, 4294901760
    %528 = vmatmul.f32.gmra.mxu0 %v527
    %v529 = vpop.f32.mrf.mxu0
    %v530 = vadd.f32 %v429, %v529
    %531 = vdwg.mxu0
    %v532 = vand.u32 %v48, 4294901760
    %v533 = vsub.f32 %v48, %v532
    %534 = vmatpush.msra.mxu0 %v533
    %v535 = vand.u32 %v47, 4294901760
    %v536 = vsub.f32 %v47, %v535
    %537 = vmatpush.msra.mxu0 %v536
    %v538 = vand.u32 %v46, 4294901760
    %v539 = vsub.f32 %v46, %v538
    %540 = vmatpush.msra.mxu0 %v539
    %v541 = vand.u32 %v45, 4294901760
    %v542 = vsub.f32 %v45, %v541
    %543 = vmatpush.msra.mxu0 %v542
    %v544 = vand.u32 %v44, 4294901760
    %v545 = vsub.f32 %v44, %v544
    %546 = vmatpush.msra.mxu0 %v545
    %v547 = vand.u32 %v43, 4294901760
    %v548 = vsub.f32 %v43, %v547
    %549 = vmatpush.msra.mxu0 %v548
    %v550 = vand.u32 %v42, 4294901760
    %v551 = vsub.f32 %v42, %v550
    %552 = vmatpush.msra.mxu0 %v551
    %v553 = vand.u32 %v41, 4294901760
    %v554 = vsub.f32 %v41, %v553
    %555 = vmatpush.msra.mxu0 %v554
    %v556 = vand.u32 %v40, 4294901760
    %v557 = vsub.f32 %v40, %v556
    %558 = vmatpush.msra.mxu0 %v557
    %v559 = vand.u32 %v39, 4294901760
    %v560 = vsub.f32 %v39, %v559
    %561 = vmatpush.msra.mxu0 %v560
    %v562 = vand.u32 %v38, 4294901760
    %v563 = vsub.f32 %v38, %v562
    %564 = vmatpush.msra.mxu0 %v563
    %v565 = vand.u32 %v37, 4294901760
    %v566 = vsub.f32 %v37, %v565
    %567 = vmatpush.msra.mxu0 %v566
    %v568 = vand.u32 %v36, 4294901760
    %v569 = vsub.f32 %v36, %v568
    %570 = vmatpush.msra.mxu0 %v569
    %v571 = vand.u32 %v35, 4294901760
    %v572 = vsub.f32 %v35, %v571
    %573 = vmatpush.msra.mxu0 %v572
    %v574 = vand.u32 %v34, 4294901760
    %v575 = vsub.f32 %v34, %v574
    %576 = vmatpush.msra.mxu0 %v575
    %v577 = vand.u32 %v33, 4294901760
    %v578 = vsub.f32 %v33, %v577
    %579 = vmatpush.msra.mxu0 %v578
    %v580 = vand.u32 %v16, 4294901760
    %v581 = vsub.f32 %v16, %v580
    %582 = vmatmul.f32.gmra.mxu0 %v581
    %v583 = vpop.f32.mrf.mxu0
    %v584 = vadd.f32 %v530, %v583
    %585 = vdwg.mxu0
    %v586 = vand.u32 %v48, 4294901760
    %587 = vmatpush.msra.mxu0 %v586
    %v588 = vand.u32 %v47, 4294901760
    %589 = vmatpush.msra.mxu0 %v588
    %v590 = vand.u32 %v46, 4294901760
    %591 = vmatpush.msra.mxu0 %v590
    %v592 = vand.u32 %v45, 4294901760
    %593 = vmatpush.msra.mxu0 %v592
    %v594 = vand.u32 %v44, 4294901760
    %595 = vmatpush.msra.mxu0 %v594
    %v596 = vand.u32 %v43, 4294901760
    %597 = vmatpush.msra.mxu0 %v596
    %v598 = vand.u32 %v42, 4294901760
    %599 = vmatpush.msra.mxu0 %v598
    %v600 = vand.u32 %v41, 4294901760
    %601 = vmatpush.msra.mxu0 %v600
    %v602 = vand.u32 %v40, 4294901760
    %603 = vmatpush.msra.mxu0 %v602
    %v604 = vand.u32 %v39, 4294901760
    %605 = vmatpush.msra.mxu0 %v604
    %v606 = vand.u32 %v38, 4294901760
    %607 = vmatpush.msra.mxu0 %v606
    %v608 = vand.u32 %v37, 4294901760
    %609 = vmatpush.msra.mxu0 %v608
    %v610 = vand.u32 %v36, 4294901760
    %611 = vmatpush.msra.mxu0 %v610
    %v612 = vand.u32 %v35, 4294901760
    %613 = vmatpush.msra.mxu0 %v612
    %v614 = vand.u32 %v34, 4294901760
    %615 = vmatpush.msra.mxu0 %v614
    %v616 = vand.u32 %v33, 4294901760
    %617 = vmatpush.msra.mxu0 %v616
    %v618 = vand.u32 %v16, 4294901760
    %v619 = vsub.f32 %v16, %v618
    %v620 = vand.u32 %v619, 4294901760
    %621 = vmatmul.f32.gmra.mxu0 %v620
    %v622 = vpop.f32.mrf.mxu0
    %v623 = vadd.f32 %v584, %v622
    %624 = vdwg.mxu0
    %v625 = vand.u32 %v48, 4294901760
    %v626 = vsub.f32 %v48, %v625
    %v627 = vand.u32 %v626, 4294901760
    %628 = vmatpush.msra.mxu0 %v627
    %v629 = vand.u32 %v47, 4294901760
    %v630 = vsub.f32 %v47, %v629
    %v631 = vand.u32 %v630, 4294901760
    %632 = vmatpush.msra.mxu0 %v631
    %v633 = vand.u32 %v46, 4294901760
    %v634 = vsub.f32 %v46, %v633
    %v635 = vand.u32 %v634, 4294901760
    %636 = vmatpush.msra.mxu0 %v635
    %v637 = vand.u32 %v45, 4294901760
    %v638 = vsub.f32 %v45, %v637
    %v639 = vand.u32 %v638, 4294901760
    %640 = vmatpush.msra.mxu0 %v639
    %v641 = vand.u32 %v44, 4294901760
    %v642 = vsub.f32 %v44, %v641
    %v643 = vand.u32 %v642, 4294901760
    %644 = vmatpush.msra.mxu0 %v643
    %v645 = vand.u32 %v43, 4294901760
    %v646 = vsub.f32 %v43, %v645
    %v647 = vand.u32 %v646, 4294901760
    %648 = vmatpush.msra.mxu0 %v647
    %v649 = vand.u32 %v42, 4294901760
    %v650 = vsub.f32 %v42, %v649
    %v651 = vand.u32 %v650, 4294901760
    %652 = vmatpush.msra.mxu0 %v651
    %v653 = vand.u32 %v41, 4294901760
    %v654 = vsub.f32 %v41, %v653
    %v655 = vand.u32 %v654, 4294901760
    %656 = vmatpush.msra.mxu0 %v655
    %v657 = vand.u32 %v40, 4294901760
    %v658 = vsub.f32 %v40, %v657
    %v659 = vand.u32 %v658, 4294901760
    %660 = vmatpush.msra.mxu0 %v659
    %v661 = vand.u32 %v39, 4294901760
    %v662 = vsub.f32 %v39, %v661
    %v663 = vand.u32 %v662, 4294901760
    %664 = vmatpush.msra.mxu0 %v663
    %v665 = vand.u32 %v38, 4294901760
    %v666 = vsub.f32 %v38, %v665
    %v667 = vand.u32 %v666, 4294901760
    %668 = vmatpush.msra.mxu0 %v667
    %v669 = vand.u32 %v37, 4294901760
    %v670 = vsub.f32 %v37, %v669
    %v671 = vand.u32 %v670, 4294901760
    %672 = vmatpush.msra.mxu0 %v671
    %v673 = vand.u32 %v36, 4294901760
    %v674 = vsub.f32 %v36, %v673
    %v675 = vand.u32 %v674, 4294901760
    %676 = vmatpush.msra.mxu0 %v675
    %v677 = vand.u32 %v35, 4294901760
    %v678 = vsub.f32 %v35, %v677
    %v679 = vand.u32 %v678, 4294901760
    %680 = vmatpush.msra.mxu0 %v679
    %v681 = vand.u32 %v34, 4294901760
    %v682 = vsub.f32 %v34, %v681
    %v683 = vand.u32 %v682, 4294901760
    %684 = vmatpush.msra.mxu0 %v683
    %v685 = vand.u32 %v33, 4294901760
    %v686 = vsub.f32 %v33, %v685
    %v687 = vand.u32 %v686, 4294901760
    %688 = vmatpush.msra.mxu0 %v687
    %v689 = vand.u32 %v16, 4294901760
    %690 = vmatmul.f32.gmra.mxu0 %v689
    %v691 = vpop.f32.mrf.mxu0
    %v692 = vadd.f32 %v623, %v691
    %693 = vdwg.mxu0
    %v694 = vand.u32 %v48, 4294901760
    %695 = vmatpush.msra.mxu0 %v694
    %v696 = vand.u32 %v47, 4294901760
    %697 = vmatpush.msra.mxu0 %v696
    %v698 = vand.u32 %v46, 4294901760
    %699 = vmatpush.msra.mxu0 %v698
    %v700 = vand.u32 %v45, 4294901760
    %701 = vmatpush.msra.mxu0 %v700
    %v702 = vand.u32 %v44, 4294901760
    %703 = vmatpush.msra.mxu0 %v702
    %v704 = vand.u32 %v43, 4294901760
    %705 = vmatpush.msra.mxu0 %v704
    %v706 = vand.u32 %v42, 4294901760
    %707 = vmatpush.msra.mxu0 %v706
    %v708 = vand.u32 %v41, 4294901760
    %709 = vmatpush.msra.mxu0 %v708
    %v710 = vand.u32 %v40, 4294901760
    %711 = vmatpush.msra.mxu0 %v710
    %v712 = vand.u32 %v39, 4294901760
    %713 = vmatpush.msra.mxu0 %v712
    %v714 = vand.u32 %v38, 4294901760
    %715 = vmatpush.msra.mxu0 %v714
    %v716 = vand.u32 %v37, 4294901760
    %717 = vmatpush.msra.mxu0 %v716
    %v718 = vand.u32 %v36, 4294901760
    %719 = vmatpush.msra.mxu0 %v718
    %v720 = vand.u32 %v35, 4294901760
    %721 = vmatpush.msra.mxu0 %v720
    %v722 = vand.u32 %v34, 4294901760
    %723 = vmatpush.msra.mxu0 %v722
    %v724 = vand.u32 %v33, 4294901760
    %725 = vmatpush.msra.mxu0 %v724
    %v726 = vand.u32 %v16, 4294901760
    %727 = vmatmul.f32.gmra.mxu0 %v726
    %v728 = vpop.f32.mrf.mxu0
    %v729 = vadd.f32 %v692, %v728
    %730 = vdwg.mxu0
    %v731 = vld [vmem:[%s2] sm:$0x1]
    %v733 = vperm.slane %v731, 0
    %v735 = vmul.f32 %v729, %v733
    %vm736 = vcmask 130048
    %737 = vst.msk [vmem:[#allocation2] sm:$0xff] %vm736, %v735
    // Predicated region
    $region14: #{tpu_custom_call.1} parent=1 // pred_check
      _
    $region15: #{tpu_custom_call.1} parent=1 // pred_check_branch
      %739 = sbr.rel (0) target = $region17
    $region16: #{tpu_custom_call.1} parent=1 // pred_region
      %741 = vsyncadd [#allocation3], 0
      %s743 = sshll.u32 [#allocation2], 4
      %s744 = int_to_ptr.vmem [resolvable:$true] %s743
      %s745 = sshll.u32 %s3, 4
      %s746 = int_to_ptr.hbm [resolvable:$true] %s745
      %748 = dma.vmem_to_hbm [thread:$0]  %s744, 128, %s746, [#allocation3]
    $region17: #{tpu_custom_call.1} parent=1 // pred_fallthru
      _
    // Predicated region
    $region18: #{tpu_custom_call.1} parent=1 // pred_check
      _
    $region19: #{tpu_custom_call.1} parent=1 // pred_check_branch
      %750 = sbr.rel (0) target = $region21
    $region20: #{tpu_custom_call.1} parent=1 // pred_region
      %752 = dma.done [#allocation3], 128
    $region21: #{tpu_custom_call.1} parent=1 // pred_fallthru
      _
    %753 = vsyncpa [#allocation3], 1

</llo_original>
